<compile_context>
chip_gen: v6e
topology: v6e:2x2x1
jax: 0.10.0
libtpu: 0.0.40
codegen_flags: <defaults>
</compile_context>

<pallas_src>
import jax
import jax.numpy as jnp
from jax.experimental import pallas as pl
from jax.experimental.pallas import tpu as pltpu


MAX_TILE_B = 4096  # max lanes per grid step; multiple of 128


def critic_kernel(state_ref, action_ref,
                  w1_ref, b1_ref, w2_ref, b2_ref, w3_ref, b3_ref,
                  out_ref):
    # state/action: (1, TB) lane-dense rows.
    s = state_ref[...]                 # (1, TB)
    a = action_ref[...]                # (1, TB)

    # fc1 + ReLU on the VPU (no concat, no K=2 matmul):
    #   h1[f, b] = w1[f, 0]*state[b] + w1[f, 1]*action[b] + b1[f]
    h1 = w1_ref[:, 0:1] * s + w1_ref[:, 1:2] * a + b1_ref[...]   # (64, TB)
    h1 = jnp.maximum(h1, 0.0)

    # fc2 + ReLU on the MXU: (64, 64) @ (64, TB) -> (64, TB), f32 accumulate.
    h2 = jnp.dot(w2_ref[...], h1, preferred_element_type=jnp.float32)
    h2 = jnp.maximum(h2 + b2_ref[...], 0.0)                      # (64, TB)

    # out layer on VPU + XLU sublane reduction (N=1, keep it off the MXU).
    y = jnp.sum(h2 * w3_ref[...], axis=0, keepdims=True) + b3_ref[...]  # (1, TB)

    out_ref[...] = y.astype(out_ref.dtype)


def critic_forward(state, action, params, *, max_tile_b=MAX_TILE_B):
    """state: (B, 1) f32, action: (B, 1) f32 -> (B, 1) f32."""
    B = state.shape[0]
    w1, b1, w2, b2, w3, b3 = params  # (2,64),(1,64),(64,64),(1,64),(64,1),(1,1)

    # Lane-dense, transposed presentation (batch on lanes).  (B,1)->(1,B) is a
    # contiguity-preserving reshape -> no HBM copy.
    s_row = state.reshape(1, B)
    a_row = action.reshape(1, B)

    w1t = jnp.transpose(w1)           # (64, 2)  feature-major
    b1c = b1.reshape(64, 1)           # (64, 1)
    w2t = jnp.transpose(w2)           # (64, 64) out-major so kernel does W @ h
    b2c = b2.reshape(64, 1)           # (64, 1)
    w3c = w3                          # (64, 1)
    b3s = b3.reshape(1, 1)            # (1, 1)

    # Adaptive lane tile: multiple of 128, no bigger than needed, capped so
    # intermediates (64 x tile_b f32) stay small in VMEM.
    tile_b = min(max_tile_b, ((B + 127) // 128) * 128)
    n_tiles = pl.cdiv(B, tile_b)      # ragged last tile handled by Pallas

    def resident(arr):
        # Whole array every grid step (constant block index -> stays in VMEM).
        return pl.BlockSpec(arr.shape, lambda i: (0, 0))

    out_row = pl.pallas_call(
        critic_kernel,
        out_shape=jax.ShapeDtypeStruct((1, B), jnp.float32),
        grid=(n_tiles,),
        in_specs=[
            pl.BlockSpec((1, tile_b), lambda i: (0, i)),   # state row tile
            pl.BlockSpec((1, tile_b), lambda i: (0, i)),   # action row tile
            resident(w1t), resident(b1c),
            resident(w2t), resident(b2c),
            resident(w3c), resident(b3s),
        ],
        out_specs=pl.BlockSpec((1, tile_b), lambda i: (0, i)),
        compiler_params=pltpu.CompilerParams(
            dimension_semantics=("parallel",)),
    )(s_row, a_row, w1t, b1c, w2t, b2c, w3c, b3s)

    return out_row.reshape(B, 1)


def init_params(key):
    """Deterministic init mimicking nn.Linear's U(-1/sqrt(fan_in), 1/sqrt(fan_in))."""
    ks = jax.random.split(key, 6)

    def linear(kw, kb, fan_in, fan_out):
        bound = 1.0 / jnp.sqrt(jnp.float32(fan_in))
        # Stored as (in, out) so the reference does x @ W + b.
        w = jax.random.uniform(kw, (fan_in, fan_out), jnp.float32, -bound, bound)
        b = jax.random.uniform(kb, (1, fan_out), jnp.float32, -bound, bound)
        return w, b

    w1, b1 = linear(ks[0], ks[1], 2, 64)
    w2, b2 = linear(ks[2], ks[3], 64, 64)
    w3, b3 = linear(ks[4], ks[5], 64, 1)
    return (w1, b1, w2, b2, w3, b3)


def critic_reference(state, action, params):
    w1, b1, w2, b2, w3, b3 = params
    x = jnp.concatenate([state, action], axis=1)
    x = jax.nn.relu(x @ w1 + b1)
    x = jax.nn.relu(x @ w2 + b2)
    return x @ w3 + b3


if __name__ == "__main__":
    key = jax.random.PRNGKey(0)
    k_params, k_state, k_action = jax.random.split(key, 3)
    params = init_params(k_params)

    critic_jit = jax.jit(lambda s, a: critic_forward(s, a, params))

    # Small demo batch (fixed pallas_call overhead dominates at this size; the
    # kernel is meant to be amortized over large B).
    B = 8
    state = jax.random.normal(k_state, (B, 1), jnp.float32)
    action = jax.random.normal(k_action, (B, 1), jnp.float32)

    out = jax.block_until_ready(critic_jit(state, action))
    ref = critic_reference(state, action, params)
    assert out.shape == (B, 1)
    assert jnp.allclose(out, ref, atol=1e-4, rtol=1e-4)

    # Larger batch exercising the ragged last tile (non-divisible B).
    B2 = 1000
    state2 = jax.random.normal(jax.random.PRNGKey(1), (B2, 1), jnp.float32)
    action2 = jax.random.normal(jax.random.PRNGKey(2), (B2, 1), jnp.float32)
    out2 = jax.block_until_ready(
        jax.jit(lambda s, a: critic_forward(s, a, params))(state2, action2))
    ref2 = critic_reference(state2, action2, params)
    assert out2.shape == (B2, 1)
    assert jnp.allclose(out2, ref2, atol=1e-4, rtol=1e-4)

    print("KERNEL_OK")
</pallas_src>

<mosaic_0001>
module attributes {stable_mosaic.version = 11 : i64} {
  func.func @critic_kernel(%arg0: i32, %arg1: memref<1x128xf32, #tpu.memory_space<vmem>>, %arg2: memref<1x128xf32, #tpu.memory_space<vmem>>, %arg3: memref<64x2xf32, #tpu.memory_space<vmem>>, %arg4: memref<64x1xf32, #tpu.memory_space<vmem>>, %arg5: memref<64x64xf32, #tpu.memory_space<vmem>>, %arg6: memref<64x1xf32, #tpu.memory_space<vmem>>, %arg7: memref<64x1xf32, #tpu.memory_space<vmem>>, %arg8: memref<1x1xf32, #tpu.memory_space<vmem>>, %arg9: memref<1x128xf32, #tpu.memory_space<vmem>>) attributes {dimension_semantics = [#tpu.dimension_semantics<parallel>], iteration_bounds = array<i64: 1>, scalar_prefetch = 0 : i64, scratch_operands = 0 : i64, tpu.core_type = #tpu.core_type<tc>, window_params = [{transform_indices = @transform_0, window_bounds = array<i64: 1, 128>}, {transform_indices = @transform_1, window_bounds = array<i64: 1, 128>}, {pipeline_mode = #tpu.pipeline_mode<synchronous>, transform_indices = @transform_2, window_bounds = array<i64: 64, 2>}, {pipeline_mode = #tpu.pipeline_mode<synchronous>, transform_indices = @transform_3, window_bounds = array<i64: 64, 1>}, {pipeline_mode = #tpu.pipeline_mode<synchronous>, transform_indices = @transform_4, window_bounds = array<i64: 64, 64>}, {pipeline_mode = #tpu.pipeline_mode<synchronous>, transform_indices = @transform_5, window_bounds = array<i64: 64, 1>}, {pipeline_mode = #tpu.pipeline_mode<synchronous>, transform_indices = @transform_6, window_bounds = array<i64: 64, 1>}, {pipeline_mode = #tpu.pipeline_mode<synchronous>, transform_indices = @transform_7, window_bounds = array<i64: 1, 1>}, {transform_indices = @transform_8, window_bounds = array<i64: 1, 128>}]} {
    %c0 = arith.constant 0 : index
    %c0_0 = arith.constant 0 : index
    %0 = vector.load %arg1[%c0, %c0_0] : memref<1x128xf32, #tpu.memory_space<vmem>>, vector<1x128xf32>
    %c0_1 = arith.constant 0 : index
    %c0_2 = arith.constant 0 : index
    %1 = vector.load %arg2[%c0_1, %c0_2] : memref<1x128xf32, #tpu.memory_space<vmem>>, vector<1x128xf32>
    %c0_3 = arith.constant 0 : index
    %c0_4 = arith.constant 0 : index
    %2 = vector.load %arg3[%c0_3, %c0_4] : memref<64x2xf32, #tpu.memory_space<vmem>>, vector<64x1xf32>
    %3 = vector.broadcast %2 : vector<64x1xf32> to vector<64x128xf32>
    %4 = vector.broadcast %0 : vector<1x128xf32> to vector<64x128xf32>
    %5 = arith.mulf %3, %4 : vector<64x128xf32>
    %c0_5 = arith.constant 0 : index
    %c1 = arith.constant 1 : index
    %6 = vector.load %arg3[%c0_5, %c1] : memref<64x2xf32, #tpu.memory_space<vmem>>, vector<64x1xf32>
    %7 = vector.broadcast %6 : vector<64x1xf32> to vector<64x128xf32>
    %8 = vector.broadcast %1 : vector<1x128xf32> to vector<64x128xf32>
    %9 = arith.mulf %7, %8 : vector<64x128xf32>
    %10 = arith.addf %5, %9 : vector<64x128xf32>
    %c0_6 = arith.constant 0 : index
    %c0_7 = arith.constant 0 : index
    %11 = vector.load %arg4[%c0_6, %c0_7] : memref<64x1xf32, #tpu.memory_space<vmem>>, vector<64x1xf32>
    %12 = vector.broadcast %11 : vector<64x1xf32> to vector<64x128xf32>
    %13 = arith.addf %10, %12 : vector<64x128xf32>
    %cst = arith.constant 0.000000e+00 : f32
    %14 = vector.broadcast %cst : f32 to vector<64x128xf32>
    %15 = arith.maximumf %13, %14 : vector<64x128xf32>
    %c0_8 = arith.constant 0 : index
    %c0_9 = arith.constant 0 : index
    %16 = vector.load %arg5[%c0_8, %c0_9] : memref<64x64xf32, #tpu.memory_space<vmem>>, vector<64x64xf32>
    %cst_10 = arith.constant dense<0.000000e+00> : vector<64x128xf32>
    %17 = tpu.matmul %16, %15, %cst_10 {dimension_numbers = #tpu.dot_dimension_numbers<[1], [0], [0], [1], [0, 0, 1, 1], [], []>} : vector<64x64xf32>, vector<64x128xf32>, vector<64x128xf32> -> vector<64x128xf32>
    %c0_11 = arith.constant 0 : index
    %c0_12 = arith.constant 0 : index
    %18 = vector.load %arg6[%c0_11, %c0_12] : memref<64x1xf32, #tpu.memory_space<vmem>>, vector<64x1xf32>
    %19 = vector.broadcast %18 : vector<64x1xf32> to vector<64x128xf32>
    %20 = arith.addf %17, %19 : vector<64x128xf32>
    %cst_13 = arith.constant 0.000000e+00 : f32
    %21 = vector.broadcast %cst_13 : f32 to vector<64x128xf32>
    %22 = arith.maximumf %20, %21 : vector<64x128xf32>
    %c0_14 = arith.constant 0 : index
    %c0_15 = arith.constant 0 : index
    %23 = vector.load %arg7[%c0_14, %c0_15] : memref<64x1xf32, #tpu.memory_space<vmem>>, vector<64x1xf32>
    %24 = vector.broadcast %23 : vector<64x1xf32> to vector<64x128xf32>
    %25 = arith.mulf %22, %24 : vector<64x128xf32>
    %cst_16 = arith.constant dense<0.000000e+00> : vector<128xf32>
    %26 = vector.multi_reduction <add>, %25, %cst_16 [0] : vector<64x128xf32> to vector<128xf32>
    %27 = vector.shape_cast %26 : vector<128xf32> to vector<1x128xf32>
    %c0_17 = arith.constant 0 : index
    %c0_18 = arith.constant 0 : index
    %28 = vector.load %arg8[%c0_17, %c0_18] : memref<1x1xf32, #tpu.memory_space<vmem>>, vector<1x1xf32>
    %29 = vector.broadcast %28 : vector<1x1xf32> to vector<1x128xf32>
    %30 = arith.addf %27, %29 : vector<1x128xf32>
    %c0_19 = arith.constant 0 : index
    %c0_20 = arith.constant 0 : index
    %31 = vector.load %arg9[%c0_19, %c0_20] : memref<1x128xf32, #tpu.memory_space<vmem>>, vector<1x128xf32>
    tpu.vector_store %arg9[%c0_19, %c0_20], %30 {strides = array<i32>} : memref<1x128xf32, #tpu.memory_space<vmem>>, vector<1x128xf32>,
    return
  }
  func.func @transform_0(%arg0: i32) -> (i32, i32) {
    %c0_i32 = arith.constant 0 : i32
    %c0_i32_0 = arith.constant 0 : i32
    return %c0_i32, %arg0 : i32, i32
  }
  func.func @transform_1(%arg0: i32) -> (i32, i32) {
    %c0_i32 = arith.constant 0 : i32
    %c0_i32_0 = arith.constant 0 : i32
    return %c0_i32, %arg0 : i32, i32
  }
  func.func @transform_2(%arg0: i32) -> (i32, i32) {
    %c0_i32 = arith.constant 0 : i32
    %c0_i32_0 = arith.constant 0 : i32
    %c0_i32_1 = arith.constant 0 : i32
    return %c0_i32, %c0_i32_0 : i32, i32
  }
  func.func @transform_3(%arg0: i32) -> (i32, i32) {
    %c0_i32 = arith.constant 0 : i32
    %c0_i32_0 = arith.constant 0 : i32
    %c0_i32_1 = arith.constant 0 : i32
    return %c0_i32, %c0_i32_0 : i32, i32
  }
  func.func @transform_4(%arg0: i32) -> (i32, i32) {
    %c0_i32 = arith.constant 0 : i32
    %c0_i32_0 = arith.constant 0 : i32
    %c0_i32_1 = arith.constant 0 : i32
    return %c0_i32, %c0_i32_0 : i32, i32
  }
  func.func @transform_5(%arg0: i32) -> (i32, i32) {
    %c0_i32 = arith.constant 0 : i32
    %c0_i32_0 = arith.constant 0 : i32
    %c0_i32_1 = arith.constant 0 : i32
    return %c0_i32, %c0_i32_0 : i32, i32
  }
  func.func @transform_6(%arg0: i32) -> (i32, i32) {
    %c0_i32 = arith.constant 0 : i32
    %c0_i32_0 = arith.constant 0 : i32
    %c0_i32_1 = arith.constant 0 : i32
    return %c0_i32, %c0_i32_0 : i32, i32
  }
  func.func @transform_7(%arg0: i32) -> (i32, i32) {
    %c0_i32 = arith.constant 0 : i32
    %c0_i32_0 = arith.constant 0 : i32
    %c0_i32_1 = arith.constant 0 : i32
    return %c0_i32, %c0_i32_0 : i32, i32
  }
  func.func @transform_8(%arg0: i32) -> (i32, i32) {
    %c0_i32 = arith.constant 0 : i32
    %c0_i32_0 = arith.constant 0 : i32
    return %c0_i32, %arg0 : i32, i32
  }
}

</mosaic_0001>

<llo_original>
// kernel: _lambda_.1
$region0: #{_lambda_.1}
  #allocation0 [shape = 'u32[]', space=smem, size = 0x4, offset = 0x4, fixed_abs, tag = 'smem constant byte address 0x4 - core index']
  #allocation1 [shape = 'u32[144,128]{1,0:T(1,128)}', space=vmem, size = 0x12000, scoped, tag = 'internal scratch']
  #allocation2 [shape = 'f32[1,1]{1,0:T(1,128)S(1)}', space=vmem, size = 0x200, scoped, tag = 'scoped memory for _lambda_.1']
  %s0 = inlined_call_operand.vmem [shape: f32[1,8], index: 0, kind: input, shape index: {}]
  %s1 = inlined_call_operand.vmem [shape: f32[1,8], index: 1, kind: input, shape index: {}]
  %s2 = inlined_call_operand.hbm [shape: f32[64,2], index: 2, kind: input, shape index: {}]
  %s3 = inlined_call_operand.hbm [shape: f32[64,1], index: 3, kind: input, shape index: {}]
  %s4 = inlined_call_operand.hbm [shape: f32[64,64], index: 4, kind: input, shape index: {}]
  %s5 = inlined_call_operand.hbm [shape: f32[64,1], index: 5, kind: input, shape index: {}]
  %s6 = inlined_call_operand.hbm [shape: f32[64,1], index: 6, kind: input, shape index: {}]
  %s7 = inlined_call_operand.<no memory space> [shape: f32[1,1], index: 7, kind: input, shape index: {}]
  %s8 = inlined_call_operand.hbm [shape: f32[1,8], index: 8, kind: output, shape index: {}]
  %s9 = sld [smem:[#allocation0]]
  $region62: #{_lambda_.1} parent=0
    _
  %s11 = ssub.s32 1, %s9
  %s12 = scalar_select 0, %s11, %s9
  %v13 = vstv %s7
  %14 = vst [vmem:[#allocation2] sm:$0x1] %v13
  $region1: #{_lambda_.1} parent=0
    #allocation3 [shape = 'u8[32768]{0}', space=vmem, size = 0x8000, scoped, tag = 'input window, operand 2, single buffered']
    #allocation4 [shape = 's32[1]{0}', space=sflag, size = 0x4, scoped, tag = 'scoped memory for _lambda_.1']
    #allocation5 [shape = 's32[1]{0}', space=sflag, size = 0x4, scoped, tag = 'scoped memory for _lambda_.1']
    #allocation6 [shape = 'u8[32768]{0}', space=vmem, size = 0x8000, scoped, tag = 'input window, operand 3, single buffered']
    #allocation7 [shape = 's32[1]{0}', space=sflag, size = 0x4, scoped, tag = 'scoped memory for _lambda_.1']
    #allocation8 [shape = 'u8[32768]{0}', space=vmem, size = 0x8000, scoped, tag = 'input window, operand 4, single buffered']
    #allocation9 [shape = 'u8[32768]{0}', space=vmem, size = 0x8000, scoped, tag = 'input window, operand 5, single buffered']
    #allocation10 [shape = 's32[1]{0}', space=sflag, size = 0x4, scoped, tag = 'scoped memory for _lambda_.1']
    #allocation11 [shape = 'u8[32768]{0}', space=vmem, size = 0x8000, scoped, tag = 'input window, operand 6, single buffered']
    #allocation12 [shape = 'u8[512]{0}', space=vmem, size = 0x400, scoped, tag = 'output window, operand 0, single buffered']
    %15 = vsyncpa [#allocation4], 0
    %16 = vsyncpa [#allocation7], 0
    %17 = vsyncpa [#allocation10], 0
    %18 = vsyncpa [#allocation5], 0
    // Predicated region
    $region2: #{_lambda_.1} parent=1 // pred_check
      _
    $region3: #{_lambda_.1} parent=1 // pred_check_branch
      %20 = sbr.rel (0) target = $region5
    $region4: #{_lambda_.1} parent=1 // pred_region
      _
    $region5: #{_lambda_.1} parent=1 // pred_fallthru
      _
    // Predicated region
    $region6: #{_lambda_.1} parent=1 // pred_check
      _
    $region7: #{_lambda_.1} parent=1 // pred_check_branch
      %22 = sbr.rel (0) target = $region9
    $region8: #{_lambda_.1} parent=1 // pred_region
      _
    $region9: #{_lambda_.1} parent=1 // pred_fallthru
      _
    // Predicated region
    $region10: #{_lambda_.1} parent=1 // pred_check
      _
    $region11: #{_lambda_.1} parent=1 // pred_check_branch
      %24 = sbr.rel (0) target = $region13
    $region12: #{_lambda_.1} parent=1 // pred_region
      %s26 = ssub.s32 1024, 1024
      %27 = vsyncadd [#allocation4], %s26
      %s28 = sshll.u32 [#allocation3], 4
      %s29 = int_to_ptr.vmem [resolvable:$true] %s28
      %34 = dma.hbm_to_vmem [thread:$0]  %s2, 1024, %s29, [#allocation4], 128, 128, 8
    $region13: #{_lambda_.1} parent=1 // pred_fallthru
      _
    // Predicated region
    $region14: #{_lambda_.1} parent=1 // pred_check
      _
    $region15: #{_lambda_.1} parent=1 // pred_check_branch
      %36 = sbr.rel (0) target = $region17
    $region16: #{_lambda_.1} parent=1 // pred_region
      %s38 = ssub.s32 1024, 1024
      %39 = vsyncadd [#allocation7], %s38
      %s40 = sshll.u32 [#allocation6], 4
      %s41 = int_to_ptr.vmem [resolvable:$true] %s40
      %46 = dma.hbm_to_vmem [thread:$0]  %s3, 1024, %s41, [#allocation7], 128, 128, 8
    $region17: #{_lambda_.1} parent=1 // pred_fallthru
      _
    // Predicated region
    $region18: #{_lambda_.1} parent=1 // pred_check
      _
    $region19: #{_lambda_.1} parent=1 // pred_check_branch
      %48 = sbr.rel (0) target = $region21
    $region20: #{_lambda_.1} parent=1 // pred_region
      %s50 = ssub.s32 1024, 1024
      %51 = vsyncadd [#allocation7], %s50
      %s52 = sshll.u32 [#allocation8], 4
      %s53 = int_to_ptr.vmem [resolvable:$true] %s52
      %58 = dma.hbm_to_vmem [thread:$0]  %s4, 1024, %s53, [#allocation7], 128, 128, 8
    $region21: #{_lambda_.1} parent=1 // pred_fallthru
      _
    // Predicated region
    $region22: #{_lambda_.1} parent=1 // pred_check
      _
    $region23: #{_lambda_.1} parent=1 // pred_check_branch
      %60 = sbr.rel (0) target = $region25
    $region24: #{_lambda_.1} parent=1 // pred_region
      %s62 = ssub.s32 1024, 1024
      %63 = vsyncadd [#allocation10], %s62
      %s64 = sshll.u32 [#allocation9], 4
      %s65 = int_to_ptr.vmem [resolvable:$true] %s64
      %70 = dma.hbm_to_vmem [thread:$0]  %s5, 1024, %s65, [#allocation10], 128, 128, 8
    $region25: #{_lambda_.1} parent=1 // pred_fallthru
      _
    // Predicated region
    $region26: #{_lambda_.1} parent=1 // pred_check
      _
    $region27: #{_lambda_.1} parent=1 // pred_check_branch
      %72 = sbr.rel (0) target = $region29
    $region28: #{_lambda_.1} parent=1 // pred_region
      %s74 = ssub.s32 1024, 1024
      %75 = vsyncadd [#allocation10], %s74
      %s76 = sshll.u32 [#allocation11], 4
      %s77 = int_to_ptr.vmem [resolvable:$true] %s76
      %82 = dma.hbm_to_vmem [thread:$0]  %s6, 1024, %s77, [#allocation10], 128, 128, 8
    $region29: #{_lambda_.1} parent=1 // pred_fallthru
      _
    // Predicated region
    $region30: #{_lambda_.1} parent=1 // pred_check
      _
    $region31: #{_lambda_.1} parent=1 // pred_check_branch
      %84 = sbr.rel (0) target = $region33
    $region32: #{_lambda_.1} parent=1 // pred_region
      _
    $region33: #{_lambda_.1} parent=1 // pred_fallthru
      _
    // Predicated region
    $region34: #{_lambda_.1} parent=1 // pred_check
      _
    $region35: #{_lambda_.1} parent=1 // pred_check_branch
      %86 = sbr.rel (0) target = $region37
    $region36: #{_lambda_.1} parent=1 // pred_region
      %87 = dma.done [#allocation4], 1024
    $region37: #{_lambda_.1} parent=1 // pred_fallthru
      _
    // Predicated region
    $region38: #{_lambda_.1} parent=1 // pred_check
      _
    $region39: #{_lambda_.1} parent=1 // pred_check_branch
      %89 = sbr.rel (0) target = $region41
    $region40: #{_lambda_.1} parent=1 // pred_region
      %90 = dma.done [#allocation7], 1024
    $region41: #{_lambda_.1} parent=1 // pred_fallthru
      _
    // Predicated region
    $region42: #{_lambda_.1} parent=1 // pred_check
      _
    $region43: #{_lambda_.1} parent=1 // pred_check_branch
      %92 = sbr.rel (0) target = $region45
    $region44: #{_lambda_.1} parent=1 // pred_region
      %93 = dma.done [#allocation7], 1024
    $region45: #{_lambda_.1} parent=1 // pred_fallthru
      _
    // Predicated region
    $region46: #{_lambda_.1} parent=1 // pred_check
      _
    $region47: #{_lambda_.1} parent=1 // pred_check_branch
      %95 = sbr.rel (0) target = $region49
    $region48: #{_lambda_.1} parent=1 // pred_region
      %96 = dma.done [#allocation10], 1024
    $region49: #{_lambda_.1} parent=1 // pred_fallthru
      _
    // Predicated region
    $region50: #{_lambda_.1} parent=1 // pred_check
      _
    $region51: #{_lambda_.1} parent=1 // pred_check_branch
      %98 = sbr.rel (0) target = $region53
    $region52: #{_lambda_.1} parent=1 // pred_region
      %99 = dma.done [#allocation10], 1024
    $region53: #{_lambda_.1} parent=1 // pred_fallthru
      _
    %v100 = vld [vmem:[%s0] sm:$0x1]
    %v101 = vld [vmem:[%s1] sm:$0x1]
    %v102 = vld [vmem:[#allocation3] sm:$0xff]
    %v103 = vld [vmem:[#allocation3 + $0x8] sm:$0xff]
    %v104 = vld [vmem:[#allocation3 + $0x10] sm:$0xff]
    %v105 = vld [vmem:[#allocation3 + $0x18] sm:$0xff]
    %v106 = vld [vmem:[#allocation3 + $0x20] sm:$0xff]
    %v107 = vld [vmem:[#allocation3 + $0x28] sm:$0xff]
    %v108 = vld [vmem:[#allocation3 + $0x30] sm:$0xff]
    %v109 = vld [vmem:[#allocation3 + $0x38] sm:$0xff]
    %111 = vset.pattern.permute.xlu0 0
    %112 = vperm.xlu0 %111, %v102
    %v113 = vpop.permute.xlu0 %112
    %116 = vset.pattern.permute.xlu0 0
    %117 = vperm.xlu0 %116, %v103
    %v118 = vpop.permute.xlu0 %117
    %121 = vset.pattern.permute.xlu0 0
    %122 = vperm.xlu0 %121, %v104
    %v123 = vpop.permute.xlu0 %122
    %126 = vset.pattern.permute.xlu0 0
    %127 = vperm.xlu0 %126, %v105
    %v128 = vpop.permute.xlu0 %127
    %131 = vset.pattern.permute.xlu0 0
    %132 = vperm.xlu0 %131, %v106
    %v133 = vpop.permute.xlu0 %132
    %136 = vset.pattern.permute.xlu0 0
    %137 = vperm.xlu0 %136, %v107
    %v138 = vpop.permute.xlu0 %137
    %141 = vset.pattern.permute.xlu0 0
    %142 = vperm.xlu0 %141, %v108
    %v143 = vpop.permute.xlu0 %142
    %146 = vset.pattern.permute.xlu0 0
    %147 = vperm.xlu0 %146, %v109
    %v148 = vpop.permute.xlu0 %147
    %v151 = vlaneseq
    %v152 = vshrl.u32 %v151, 7
    %v153 = vsub.s32 0, %v152
    %v154 = vrot.slane %v100, %v153
    %v156 = vmul.f32 %v113, %v154
    %v157 = vmul.f32 %v118, %v154
    %v158 = vmul.f32 %v123, %v154
    %v159 = vmul.f32 %v128, %v154
    %v160 = vmul.f32 %v133, %v154
    %v161 = vmul.f32 %v138, %v154
    %v162 = vmul.f32 %v143, %v154
    %v163 = vmul.f32 %v148, %v154
    %164 = vset.pattern.permute.xlu0 1
    %165 = vperm.xlu0 %164, %v102
    %v166 = vpop.permute.xlu0 %165
    %168 = vset.pattern.permute.xlu0 1
    %169 = vperm.xlu0 %168, %v103
    %v170 = vpop.permute.xlu0 %169
    %172 = vset.pattern.permute.xlu0 1
    %173 = vperm.xlu0 %172, %v104
    %v174 = vpop.permute.xlu0 %173
    %176 = vset.pattern.permute.xlu0 1
    %177 = vperm.xlu0 %176, %v105
    %v178 = vpop.permute.xlu0 %177
    %180 = vset.pattern.permute.xlu0 1
    %181 = vperm.xlu0 %180, %v106
    %v182 = vpop.permute.xlu0 %181
    %184 = vset.pattern.permute.xlu0 1
    %185 = vperm.xlu0 %184, %v107
    %v186 = vpop.permute.xlu0 %185
    %188 = vset.pattern.permute.xlu0 1
    %189 = vperm.xlu0 %188, %v108
    %v190 = vpop.permute.xlu0 %189
    %192 = vset.pattern.permute.xlu0 1
    %193 = vperm.xlu0 %192, %v109
    %v194 = vpop.permute.xlu0 %193
    %v197 = vlaneseq
    %v198 = vshrl.u32 %v197, 7
    %v199 = vsub.s32 0, %v198
    %v200 = vrot.slane %v101, %v199
    %v202 = vmul.f32 %v166, %v200
    %v203 = vmul.f32 %v170, %v200
    %v204 = vmul.f32 %v174, %v200
    %v205 = vmul.f32 %v178, %v200
    %v206 = vmul.f32 %v182, %v200
    %v207 = vmul.f32 %v186, %v200
    %v208 = vmul.f32 %v190, %v200
    %v209 = vmul.f32 %v194, %v200
    %v210 = vadd.f32 %v156, %v202
    %v211 = vadd.f32 %v157, %v203
    %v212 = vadd.f32 %v158, %v204
    %v213 = vadd.f32 %v159, %v205
    %v214 = vadd.f32 %v160, %v206
    %v215 = vadd.f32 %v161, %v207
    %v216 = vadd.f32 %v162, %v208
    %v217 = vadd.f32 %v163, %v209
    %v218 = vld [vmem:[#allocation6] sm:$0xff]
    %v219 = vld [vmem:[#allocation6 + $0x8] sm:$0xff]
    %v220 = vld [vmem:[#allocation6 + $0x10] sm:$0xff]
    %v221 = vld [vmem:[#allocation6 + $0x18] sm:$0xff]
    %v222 = vld [vmem:[#allocation6 + $0x20] sm:$0xff]
    %v223 = vld [vmem:[#allocation6 + $0x28] sm:$0xff]
    %v224 = vld [vmem:[#allocation6 + $0x30] sm:$0xff]
    %v225 = vld [vmem:[#allocation6 + $0x38] sm:$0xff]
    %227 = vset.pattern.permute.xlu0 0
    %228 = vperm.xlu0 %227, %v218
    %v229 = vpop.permute.xlu0 %228
    %232 = vset.pattern.permute.xlu0 0
    %233 = vperm.xlu0 %232, %v219
    %v234 = vpop.permute.xlu0 %233
    %237 = vset.pattern.permute.xlu0 0
    %238 = vperm.xlu0 %237, %v220
    %v239 = vpop.permute.xlu0 %238
    %242 = vset.pattern.permute.xlu0 0
    %243 = vperm.xlu0 %242, %v221
    %v244 = vpop.permute.xlu0 %243
    %247 = vset.pattern.permute.xlu0 0
    %248 = vperm.xlu0 %247, %v222
    %v249 = vpop.permute.xlu0 %248
    %252 = vset.pattern.permute.xlu0 0
    %253 = vperm.xlu0 %252, %v223
    %v254 = vpop.permute.xlu0 %253
    %257 = vset.pattern.permute.xlu0 0
    %258 = vperm.xlu0 %257, %v224
    %v259 = vpop.permute.xlu0 %258
    %262 = vset.pattern.permute.xlu0 0
    %263 = vperm.xlu0 %262, %v225
    %v264 = vpop.permute.xlu0 %263
    %v266 = vadd.f32 %v210, %v229
    %v267 = vadd.f32 %v211, %v234
    %v268 = vadd.f32 %v212, %v239
    %v269 = vadd.f32 %v213, %v244
    %v270 = vadd.f32 %v214, %v249
    %v271 = vadd.f32 %v215, %v254
    %v272 = vadd.f32 %v216, %v259
    %v273 = vadd.f32 %v217, %v264
    %v274 = vmax.f32 %v266, 0.0
    %v275 = vmax.f32 %v267, 0.0
    %v276 = vmax.f32 %v268, 0.0
    %v277 = vmax.f32 %v269, 0.0
    %v278 = vmax.f32 %v270, 0.0
    %v279 = vmax.f32 %v271, 0.0
    %v280 = vmax.f32 %v272, 0.0
    %v281 = vmax.f32 %v273, 0.0
    %v282 = vld [vmem:[#allocation8] sm:$0xff]
    %v283 = vld [vmem:[#allocation8 + $0x8] sm:$0xff]
    %v284 = vld [vmem:[#allocation8 + $0x10] sm:$0xff]
    %v285 = vld [vmem:[#allocation8 + $0x18] sm:$0xff]
    %v286 = vld [vmem:[#allocation8 + $0x20] sm:$0xff]
    %v287 = vld [vmem:[#allocation8 + $0x28] sm:$0xff]
    %v288 = vld [vmem:[#allocation8 + $0x30] sm:$0xff]
    %v289 = vld [vmem:[#allocation8 + $0x38] sm:$0xff]
    %v290 = vld [vmem:[#allocation9] sm:$0xff]
    %v291 = vld [vmem:[#allocation9 + $0x8] sm:$0xff]
    %v292 = vld [vmem:[#allocation9 + $0x10] sm:$0xff]
    %v293 = vld [vmem:[#allocation9 + $0x18] sm:$0xff]
    %v294 = vld [vmem:[#allocation9 + $0x20] sm:$0xff]
    %v295 = vld [vmem:[#allocation9 + $0x28] sm:$0xff]
    %v296 = vld [vmem:[#allocation9 + $0x30] sm:$0xff]
    %v297 = vld [vmem:[#allocation9 + $0x38] sm:$0xff]
    %299 = vset.pattern.permute.xlu0 0
    %300 = vperm.xlu0 %299, %v290
    %v301 = vpop.permute.xlu0 %300
    %304 = vset.pattern.permute.xlu0 0
    %305 = vperm.xlu0 %304, %v291
    %v306 = vpop.permute.xlu0 %305
    %309 = vset.pattern.permute.xlu0 0
    %310 = vperm.xlu0 %309, %v292
    %v311 = vpop.permute.xlu0 %310
    %314 = vset.pattern.permute.xlu0 0
    %315 = vperm.xlu0 %314, %v293
    %v316 = vpop.permute.xlu0 %315
    %319 = vset.pattern.permute.xlu0 0
    %320 = vperm.xlu0 %319, %v294
    %v321 = vpop.permute.xlu0 %320
    %324 = vset.pattern.permute.xlu0 0
    %325 = vperm.xlu0 %324, %v295
    %v326 = vpop.permute.xlu0 %325
    %329 = vset.pattern.permute.xlu0 0
    %330 = vperm.xlu0 %329, %v296
    %v331 = vpop.permute.xlu0 %330
    %334 = vset.pattern.permute.xlu0 0
    %335 = vperm.xlu0 %334, %v297
    %v336 = vpop.permute.xlu0 %335
    %vm338 = vcmask 523264
    %v340 = vsel %vm338, %v282, 0
    %v343 = vsel %vm338, %v283, 0
    %v346 = vsel %vm338, %v284, 0
    %v349 = vsel %vm338, %v285, 0
    %v352 = vsel %vm338, %v286, 0
    %v355 = vsel %vm338, %v287, 0
    %v358 = vsel %vm338, %v288, 0
    %v361 = vsel %vm338, %v289, 0
    %363 = vmatprep.subr.mxu0 0.0
    %364 = vmatpush1.msra.mxu0 0.0
    %365 = vmatprep.subr.mxu0 0.0
    %366 = vmatpush1.msra.mxu0 0.0
    %367 = vmatprep.subr.mxu0 0.0
    %368 = vmatpush1.msra.mxu0 0.0
    %369 = vmatprep.subr.mxu0 0.0
    %370 = vmatpush1.msra.mxu0 0.0
    %371 = vmatprep.subr.mxu0 0.0
    %372 = vmatpush1.msra.mxu0 0.0
    %373 = vmatprep.subr.mxu0 0.0
    %374 = vmatpush1.msra.mxu0 0.0
    %375 = vmatprep.subr.mxu0 0.0
    %376 = vmatpush1.msra.mxu0 0.0
    %377 = vmatprep.subr.mxu0 0.0
    %378 = vmatpush1.msra.mxu0 0.0
    %379 = vmatprep.subr.mxu0 0.0
    %380 = vmatpush1.msra.mxu0 %v281
    %381 = vmatprep.subr.mxu0 0.0
    %382 = vmatpush1.msra.mxu0 %v280
    %383 = vmatprep.subr.mxu0 0.0
    %384 = vmatpush1.msra.mxu0 %v279
    %385 = vmatprep.subr.mxu0 0.0
    %386 = vmatpush1.msra.mxu0 %v278
    %387 = vmatprep.subr.mxu0 0.0
    %388 = vmatpush1.msra.mxu0 %v277
    %389 = vmatprep.subr.mxu0 0.0
    %390 = vmatpush1.msra.mxu0 %v276
    %391 = vmatprep.subr.mxu0 0.0
    %392 = vmatpush1.msra.mxu0 %v275
    %393 = vmatprep.subr.mxu0 0.0
    %394 = vmatpush1.msra.mxu0 %v274
    %395 = vmatprep.subr.mxu0 0.0
    %396 = vmatpush2.msra.mxu0 0.0
    %397 = vmatprep.subr.mxu0 0.0
    %398 = vmatpush2.msra.mxu0 0.0
    %399 = vmatprep.subr.mxu0 0.0
    %400 = vmatpush2.msra.mxu0 0.0
    %401 = vmatprep.subr.mxu0 0.0
    %402 = vmatpush2.msra.mxu0 0.0
    %403 = vmatprep.subr.mxu0 0.0
    %404 = vmatpush2.msra.mxu0 0.0
    %405 = vmatprep.subr.mxu0 0.0
    %406 = vmatpush2.msra.mxu0 0.0
    %407 = vmatprep.subr.mxu0 0.0
    %408 = vmatpush2.msra.mxu0 0.0
    %409 = vmatprep.subr.mxu0 0.0
    %410 = vmatpush2.msra.mxu0 0.0
    %411 = vmatprep.subr.mxu0 0.0
    %412 = vmatpush2.msra.mxu0 0.0
    %413 = vmatprep.subr.mxu0 0.0
    %414 = vmatpush2.msra.mxu0 0.0
    %415 = vmatprep.subr.mxu0 0.0
    %416 = vmatpush2.msra.mxu0 0.0
    %417 = vmatprep.subr.mxu0 0.0
    %418 = vmatpush2.msra.mxu0 0.0
    %419 = vmatprep.subr.mxu0 0.0
    %420 = vmatpush2.msra.mxu0 0.0
    %421 = vmatprep.subr.mxu0 0.0
    %422 = vmatpush2.msra.mxu0 0.0
    %423 = vmatprep.subr.mxu0 0.0
    %424 = vmatpush2.msra.mxu0 0.0
    %425 = vmatprep.subr.mxu0 0.0
    %426 = vmatpush2.msra.mxu0 0.0
    %427 = vmatprep.mubr.f32.mxu0 0.0
    %428 = vmatmul.mubr.f32.gmra.mxu0 %v340
    %v429 = vpop.f32.mrf.mxu0
    %v430 = vadd.f32 %v301, %v429
    %v431 = vpop.f32.mrf.mxu0
    %432 = vmatprep.mubr.f32.mxu0 0.0
    %433 = vmatmul.mubr.f32.gmra.mxu0 %v343
    %v434 = vpop.f32.mrf.mxu0
    %v435 = vadd.f32 %v306, %v434
    %v436 = vpop.f32.mrf.mxu0
    %437 = vmatprep.mubr.f32.mxu0 0.0
    %438 = vmatmul.mubr.f32.gmra.mxu0 %v346
    %v439 = vpop.f32.mrf.mxu0
    %v440 = vadd.f32 %v311, %v439
    %v441 = vpop.f32.mrf.mxu0
    %442 = vmatprep.mubr.f32.mxu0 0.0
    %443 = vmatmul.mubr.f32.gmra.mxu0 %v349
    %v444 = vpop.f32.mrf.mxu0
    %v445 = vadd.f32 %v316, %v444
    %v446 = vpop.f32.mrf.mxu0
    %447 = vmatprep.mubr.f32.mxu0 0.0
    %448 = vmatmul.mubr.f32.gmra.mxu0 %v352
    %v449 = vpop.f32.mrf.mxu0
    %v450 = vadd.f32 %v321, %v449
    %v451 = vpop.f32.mrf.mxu0
    %452 = vmatprep.mubr.f32.mxu0 0.0
    %453 = vmatmul.mubr.f32.gmra.mxu0 %v355
    %v454 = vpop.f32.mrf.mxu0
    %v455 = vadd.f32 %v326, %v454
    %v456 = vpop.f32.mrf.mxu0
    %457 = vmatprep.mubr.f32.mxu0 0.0
    %458 = vmatmul.mubr.f32.gmra.mxu0 %v358
    %v459 = vpop.f32.mrf.mxu0
    %v460 = vadd.f32 %v331, %v459
    %v461 = vpop.f32.mrf.mxu0
    %462 = vmatprep.mubr.f32.mxu0 0.0
    %463 = vmatmul.mubr.f32.gmra.mxu0 %v361
    %v464 = vpop.f32.mrf.mxu0
    %v465 = vadd.f32 %v336, %v464
    %v466 = vpop.f32.mrf.mxu0
    %467 = vdwg.mxu0
    %v468 = vmax.f32 %v430, 0.0
    %v469 = vmax.f32 %v435, 0.0
    %v470 = vmax.f32 %v440, 0.0
    %v471 = vmax.f32 %v445, 0.0
    %v472 = vmax.f32 %v450, 0.0
    %v473 = vmax.f32 %v455, 0.0
    %v474 = vmax.f32 %v460, 0.0
    %v475 = vmax.f32 %v465, 0.0
    %v476 = vld [vmem:[#allocation11] sm:$0xff]
    %v477 = vld [vmem:[#allocation11 + $0x8] sm:$0xff]
    %v478 = vld [vmem:[#allocation11 + $0x10] sm:$0xff]
    %v479 = vld [vmem:[#allocation11 + $0x18] sm:$0xff]
    %v480 = vld [vmem:[#allocation11 + $0x20] sm:$0xff]
    %v481 = vld [vmem:[#allocation11 + $0x28] sm:$0xff]
    %v482 = vld [vmem:[#allocation11 + $0x30] sm:$0xff]
    %v483 = vld [vmem:[#allocation11 + $0x38] sm:$0xff]
    %485 = vset.pattern.permute.xlu0 0
    %486 = vperm.xlu0 %485, %v476
    %v487 = vpop.permute.xlu0 %486
    %490 = vset.pattern.permute.xlu0 0
    %491 = vperm.xlu0 %490, %v477
    %v492 = vpop.permute.xlu0 %491
    %495 = vset.pattern.permute.xlu0 0
    %496 = vperm.xlu0 %495, %v478
    %v497 = vpop.permute.xlu0 %496
    %500 = vset.pattern.permute.xlu0 0
    %501 = vperm.xlu0 %500, %v479
    %v502 = vpop.permute.xlu0 %501
    %505 = vset.pattern.permute.xlu0 0
    %506 = vperm.xlu0 %505, %v480
    %v507 = vpop.permute.xlu0 %506
    %510 = vset.pattern.permute.xlu0 0
    %511 = vperm.xlu0 %510, %v481
    %v512 = vpop.permute.xlu0 %511
    %515 = vset.pattern.permute.xlu0 0
    %516 = vperm.xlu0 %515, %v482
    %v517 = vpop.permute.xlu0 %516
    %520 = vset.pattern.permute.xlu0 0
    %521 = vperm.xlu0 %520, %v483
    %v522 = vpop.permute.xlu0 %521
    %v524 = vmul.f32 %v468, %v487
    %v525 = vmul.f32 %v469, %v492
    %v526 = vmul.f32 %v470, %v497
    %v527 = vmul.f32 %v471, %v502
    %v528 = vmul.f32 %v472, %v507
    %v529 = vmul.f32 %v473, %v512
    %v530 = vmul.f32 %v474, %v517
    %v531 = vmul.f32 %v475, %v522
    %v532 = vadd.f32 %v524, %v525
    %v533 = vadd.f32 %v532, %v526
    %v534 = vadd.f32 %v533, %v527
    %v535 = vadd.f32 %v534, %v528
    %v536 = vadd.f32 %v535, %v529
    %v537 = vadd.f32 %v536, %v530
    %v538 = vadd.f32 %v537, %v531
    %v539 = vrot.slane %v538, 4
    %v540 = vadd.f32 %v538, %v539
    %v541 = vrot.slane %v540, 2
    %v542 = vadd.f32 %v540, %v541
    %v543 = vrot.slane %v542, 1
    %v544 = vadd.f32 %v542, %v543
    %v545 = vld [vmem:[#allocation2] sm:$0x1]
    %547 = vset.pattern.permute.xlu0 0
    %548 = vperm.xlu0 %547, %v545
    %v549 = vpop.permute.xlu0 %548
    %v551 = vlaneseq
    %v552 = vshrl.u32 %v551, 7
    %v553 = vsub.s32 0, %v552
    %v554 = vrot.slane %v549, %v553
    %v555 = vadd.f32 %v544, %v554
    %556 = vst [vmem:[#allocation12] sm:$0x1] %v555
    // Predicated region
    $region54: #{_lambda_.1} parent=1 // pred_check
      _
    $region55: #{_lambda_.1} parent=1 // pred_check_branch
      %558 = sbr.rel (0) target = $region57
    $region56: #{_lambda_.1} parent=1 // pred_region
      %s560 = ssub.s32 16, 16
      %561 = vsyncadd [#allocation5], %s560
      %s563 = sshll.u32 [#allocation12], 4
      %s564 = int_to_ptr.vmem [resolvable:$true] %s563
      %566 = dma.vmem_to_hbm [thread:$0]  %s564, 16, %s8, [#allocation5]
    $region57: #{_lambda_.1} parent=1 // pred_fallthru
      _
    // Predicated region
    $region58: #{_lambda_.1} parent=1 // pred_check
      _
    $region59: #{_lambda_.1} parent=1 // pred_check_branch
      %568 = sbr.rel (0) target = $region61
    $region60: #{_lambda_.1} parent=1 // pred_region
      %569 = dma.done [#allocation5], 16
    $region61: #{_lambda_.1} parent=1 // pred_fallthru
      _
    %570 = vsyncpa [#allocation4], 1
    %571 = vsyncpa [#allocation7], 1
    %572 = vsyncpa [#allocation10], 1
    %573 = vsyncpa [#allocation5], 1

</llo_original>
